<compile_context>
chip_gen: v7x
topology: tpu7x:2x2x1
jax: 0.10.0
libtpu: 0.0.40
codegen_flags: <defaults>
</compile_context>

<pallas_src>
import functools

import jax
import jax.numpy as jnp
import numpy as np
from jax.experimental import pallas as pl
from jax.experimental.pallas import tpu as pltpu


def _cdiv(a, b):
    return (a + b - 1) // b


def _round_up(n, m):
    return ((n + m - 1) // m) * m


def _sublane_multiple(dtype):
    """Packed-sublane multiple for a dtype: 8 (f32), 16 (bf16), 32 (int8/fp8)."""
    return max(8, 32 // np.dtype(dtype).itemsize)


def _pick_batch_tile(B, block_b, sub):
    """Batch-tile size.

    Small B: one tile rounded to the packed-sublane multiple.  Larger B: at
    least two 128-aligned tiles (so v7x's two TensorCores both get work under
    the 'parallel' grid axis), capped at block_b.
    """
    if B <= 256:
        return _round_up(max(B, sub), sub)
    tb_cap = _round_up(block_b, 128)
    return max(128, min(_round_up(_cdiv(B, 2), 128), tb_cap))


def _block_diag_w1(w1):
    """[A, S, H] -> block-diagonal [A*S, A*H] via static scatters (no dense einsum)."""
    A, S, H = w1.shape
    out = jnp.zeros((A, S, A * H), w1.dtype)
    for a in range(A):                       # A is a Python int -> static unroll
        out = out.at[a, :, a * H:(a + 1) * H].set(w1[a])
    return out.reshape(A * S, A * H)


def _vdn_kernel(x_ref, w1_ref, b1_ref, w2_ref, b2_ref, q_ref, *,
                share_params, n_agents, hidden):
    """One grid step = one batch tile; all agents fused via block-diag W1."""
    # Fused first linear for all agents: [TB, A*S] @ [A*S, A*H] on the MXU.
    # bf16 (or f32) inputs, f32 accumulation; all post-matmul math in f32.
    h1 = jnp.dot(x_ref[...], w1_ref[...], preferred_element_type=jnp.float32)
    h1 = jnp.maximum(h1 + b1_ref[...], 0.0)                      # ReLU, f32

    # Second linear has output width 1 per agent -> keep it OFF the MXU:
    # VPU multiply by the concatenated [1, A*H] W2 row, then lane (XLU) sums.
    prod = h1 * w2_ref[...]                                       # [TB, A*H]

    if share_params:
        # Per-agent lane-group sums so the extra ReLU applies per agent
        # BEFORE the sum over agents (matches the PyTorch shared branch).
        q = None
        for a in range(n_agents):                                 # static unroll
            s = jnp.sum(prod[:, a * hidden:(a + 1) * hidden], axis=-1)
            s = jnp.maximum(s + b2_ref[0, a], 0.0)                # [TB]
            q = s if q is None else q + s
    else:
        # No ReLU after the second linear -> the agent sum collapses to one
        # big lane sum; per-agent output biases were pre-summed to one scalar.
        q = jnp.sum(prod, axis=-1) + b2_ref[0, 0]                 # [TB]

    # Lane-dense store: batch lives in the lane dimension of the output block.
    q_ref[...] = q[None, :].astype(q_ref.dtype)


def vdn_forward(x, w1, b1, w2, b2, *, share_params=False, block_b=2048):
    """VDN critic forward.

    x : [B, A, S];  w1 : [A, S, H];  b1 : [A, H];  w2 : [A, H, 1];  b2 : [A, 1]
    Returns [B, 1] (share_params=False) or [B] (share_params=True).

    The first matmul runs in x.dtype (pass bf16 x end-to-end from the caller to
    halve the dominant HBM stream; bf16 MXU inputs are supported on v5e, v6e
    and v7x) with f32 accumulation and f32 post-matmul math.
    """
    B, A, S = x.shape
    H = w1.shape[-1]
    AS, AH = A * S, A * H

    # ---- batch tiling.  No wrapper-side padding: the grid is cdiv(B, TB) and
    # the ragged final block only pollutes output lanes that are sliced away.
    sub = _sublane_multiple(x.dtype)
    TB = _pick_batch_tile(B, block_b, sub)
    n_tiles = _cdiv(B, TB)
    B_out = n_tiles * TB

    # ---- layout plumbing only (no pad, no cast of x itself).
    x2 = x.reshape(B, AS)
    w1_bd = _block_diag_w1(w1).astype(x.dtype)          # tiny, resident in VMEM
    b1_cat = b1.reshape(1, AH).astype(jnp.float32)      # concatenated b1
    w2_row = w2[..., 0].reshape(1, AH).astype(jnp.float32)  # concatenated W2 row
    if share_params:
        b2_arg = b2.reshape(1, A).astype(jnp.float32)            # per-agent biases
    else:
        b2_arg = jnp.sum(b2).reshape(1, 1).astype(jnp.float32)   # pre-summed bias

    kernel = functools.partial(_vdn_kernel, share_params=share_params,
                               n_agents=A, hidden=H)

    # Constant-index weight/bias blocks: single-buffered (index_map never
    # changes, so double-buffering would only double their VMEM footprint).
    resident = pl.Buffered(1)

    q = pl.pallas_call(
        kernel,
        out_shape=jax.ShapeDtypeStruct((1, B_out), jnp.float32),
        grid=(n_tiles,),
        in_specs=[
            pl.BlockSpec((TB, AS), lambda i: (i, 0)),                      # x tile
            pl.BlockSpec((AS, AH), lambda i: (0, 0), pipeline_mode=resident),
            pl.BlockSpec((1, AH), lambda i: (0, 0), pipeline_mode=resident),
            pl.BlockSpec((1, AH), lambda i: (0, 0), pipeline_mode=resident),
            pl.BlockSpec(memory_space=pltpu.MemorySpace.SMEM),             # b2
        ],
        out_specs=pl.BlockSpec((1, TB), lambda i: (0, i)),                 # lane-dense
        compiler_params=pltpu.CompilerParams(
            dimension_semantics=("parallel",)),                            # megacore / v7x
    )(x2, w1_bd, b1_cat, w2_row, b2_arg)

    q = q[0, :B].astype(x.dtype)
    if share_params:
        return q                       # [B]  (torch.sum(torch.squeeze(h2, 2), 1))
    return q[:, None]                  # [B, 1]


def _reference(x, w1, b1, w2, b2, share_params=False):
    """Pure-JAX reference mirroring the PyTorch forward (f32 math)."""
    xf = x.astype(jnp.float32)
    h1 = jnp.maximum(jnp.einsum('bas,ash->bah', xf, w1) + b1[None], 0.0)
    h2 = jnp.einsum('bah,aho->bao', h1, w2) + b2[None]
    if share_params:
        h2 = jnp.maximum(h2, 0.0)
        return jnp.sum(h2[..., 0], axis=1)        # [B]
    return jnp.sum(h2, axis=1)                    # [B, 1]


if __name__ == "__main__":
    # Small shapes consistent with the module: batch=8, n_agents=4,
    # sa_dim=16, hidden_size=32.
    B, A, S, H = 8, 4, 16, 32
    key = jax.random.PRNGKey(0)
    kx, k1, k2, k3, k4, kb = jax.random.split(key, 6)

    x = jax.random.normal(kx, (B, A, S), dtype=jnp.float32)

    # Deterministic synthetic parameters (PyTorch-Linear-like uniform init).
    lim1 = 1.0 / np.sqrt(S)
    lim2 = 1.0 / np.sqrt(H)
    w1 = jax.random.uniform(k1, (A, S, H), jnp.float32, -lim1, lim1)
    b1 = jax.random.uniform(k2, (A, H), jnp.float32, -lim1, lim1)
    w2 = jax.random.uniform(k3, (A, H, 1), jnp.float32, -lim2, lim2)
    b2 = jax.random.uniform(k4, (A, 1), jnp.float32, -lim2, lim2)

    # Default PyTorch behaviour: share_params=False -> [B, 1].
    out = jax.block_until_ready(vdn_forward(x, w1, b1, w2, b2))
    ref = _reference(x, w1, b1, w2, b2)
    np.testing.assert_allclose(np.asarray(out), np.asarray(ref),
                               rtol=1e-5, atol=1e-5)
    assert out.shape == (B, 1)

    # bf16 x plumbed end-to-end from the caller (no wrapper cast): valid on
    # v5e/v6e/v7x MXUs, f32 accumulation -> looser tolerance only from bf16 I/O.
    x_bf16 = x.astype(jnp.bfloat16)
    out_bf16 = jax.block_until_ready(vdn_forward(x_bf16, w1, b1, w2, b2))
    ref_bf16 = _reference(x_bf16, w1, b1, w2, b2)
    np.testing.assert_allclose(np.asarray(out_bf16).astype(np.float32),
                               np.asarray(ref_bf16), rtol=2e-2, atol=2e-2)

    # Larger ragged batch: exercises the no-pad multi-tile path (>=2 'parallel'
    # tiles for v7x, ragged final block handled by Pallas, q[:B] slice).
    Bbig = 300
    xb = jax.random.normal(kb, (Bbig, A, S), dtype=jnp.float32)
    out_big = jax.block_until_ready(vdn_forward(xb, w1, b1, w2, b2))
    ref_big = _reference(xb, w1, b1, w2, b2)
    np.testing.assert_allclose(np.asarray(out_big), np.asarray(ref_big),
                               rtol=1e-5, atol=1e-5)
    assert out_big.shape == (Bbig, 1)

    # share_params=True branch (weights replicated across agents) -> [B].
    w1s = jnp.tile(w1[:1], (A, 1, 1)); b1s = jnp.tile(b1[:1], (A, 1))
    w2s = jnp.tile(w2[:1], (A, 1, 1)); b2s = jnp.tile(b2[:1], (A, 1))
    out_s = jax.block_until_ready(
        vdn_forward(x, w1s, b1s, w2s, b2s, share_params=True))
    ref_s = _reference(x, w1s, b1s, w2s, b2s, share_params=True)
    np.testing.assert_allclose(np.asarray(out_s), np.asarray(ref_s),
                               rtol=1e-5, atol=1e-5)
    assert out_s.shape == (B,)

    print("KERNEL_OK")
</pallas_src>

<mosaic_0001>
module attributes {stable_mosaic.version = 11 : i64} {
  func.func @_vdn_kernel(%arg0: i32, %arg1: memref<8x64xf32, #tpu.memory_space<vmem>>, %arg2: memref<64x128xf32, #tpu.memory_space<vmem>>, %arg3: memref<1x128xf32, #tpu.memory_space<vmem>>, %arg4: memref<1x128xf32, #tpu.memory_space<vmem>>, %arg5: memref<1x1xf32, #tpu.memory_space<smem>>, %arg6: memref<1x8xf32, #tpu.memory_space<vmem>>) attributes {dimension_semantics = [#tpu.dimension_semantics<parallel>], iteration_bounds = array<i64: 1>, scalar_prefetch = 0 : i64, scratch_operands = 0 : i64, tpu.core_type = #tpu.core_type<tc>, window_params = [{transform_indices = @transform_0, window_bounds = array<i64: 8, 64>}, {pipeline_mode = #tpu.pipeline_mode<synchronous>, transform_indices = @transform_1, window_bounds = array<i64: 64, 128>}, {pipeline_mode = #tpu.pipeline_mode<synchronous>, transform_indices = @transform_2, window_bounds = array<i64: 1, 128>}, {pipeline_mode = #tpu.pipeline_mode<synchronous>, transform_indices = @transform_3, window_bounds = array<i64: 1, 128>}, {transform_indices = @transform_4, window_bounds = array<i64: 1, 1>}, {transform_indices = @transform_5, window_bounds = array<i64: 1, 8>}]} {
    %c0 = arith.constant 0 : index
    %c0_0 = arith.constant 0 : index
    %0 = vector.load %arg1[%c0, %c0_0] : memref<8x64xf32, #tpu.memory_space<vmem>>, vector<8x64xf32>
    %c0_1 = arith.constant 0 : index
    %c0_2 = arith.constant 0 : index
    %1 = vector.load %arg2[%c0_1, %c0_2] : memref<64x128xf32, #tpu.memory_space<vmem>>, vector<64x128xf32>
    %cst = arith.constant dense<0.000000e+00> : vector<8x128xf32>
    %2 = tpu.matmul %0, %1, %cst {dimension_numbers = #tpu.dot_dimension_numbers<[1], [0], [0], [1], [0, 0, 1, 1], [], []>} : vector<8x64xf32>, vector<64x128xf32>, vector<8x128xf32> -> vector<8x128xf32>
    %c0_3 = arith.constant 0 : index
    %c0_4 = arith.constant 0 : index
    %3 = vector.load %arg3[%c0_3, %c0_4] : memref<1x128xf32, #tpu.memory_space<vmem>>, vector<1x128xf32>
    %4 = vector.broadcast %3 : vector<1x128xf32> to vector<8x128xf32>
    %5 = arith.addf %2, %4 : vector<8x128xf32>
    %cst_5 = arith.constant 0.000000e+00 : f32
    %6 = vector.broadcast %cst_5 : f32 to vector<8x128xf32>
    %7 = arith.maximumf %5, %6 : vector<8x128xf32>
    %c0_6 = arith.constant 0 : index
    %c0_7 = arith.constant 0 : index
    %8 = vector.load %arg4[%c0_6, %c0_7] : memref<1x128xf32, #tpu.memory_space<vmem>>, vector<1x128xf32>
    %9 = vector.broadcast %8 : vector<1x128xf32> to vector<8x128xf32>
    %10 = arith.mulf %7, %9 : vector<8x128xf32>
    %cst_8 = arith.constant dense<0.000000e+00> : vector<8xf32>
    %11 = vector.multi_reduction <add>, %10, %cst_8 [1] : vector<8x128xf32> to vector<8xf32>
    %c0_9 = arith.constant 0 : index
    %c0_10 = arith.constant 0 : index
    %12 = memref.load %arg5[%c0_9, %c0_10] : memref<1x1xf32, #tpu.memory_space<smem>>
    %13 = vector.broadcast %12 : f32 to vector<8xf32>
    %14 = arith.addf %11, %13 : vector<8xf32>
    %15 = vector.shape_cast %14 : vector<8xf32> to vector<1x8xf32>
    %c0_11 = arith.constant 0 : index
    %c0_12 = arith.constant 0 : index
    %16 = vector.load %arg6[%c0_11, %c0_12] : memref<1x8xf32, #tpu.memory_space<vmem>>, vector<1x8xf32>
    tpu.vector_store %arg6[%c0_11, %c0_12], %15 {strides = array<i32>} : memref<1x8xf32, #tpu.memory_space<vmem>>, vector<1x8xf32>,
    return
  }
  func.func @transform_0(%arg0: i32) -> (i32, i32) {
    %c0_i32 = arith.constant 0 : i32
    %c0_i32_0 = arith.constant 0 : i32
    return %arg0, %c0_i32 : i32, i32
  }
  func.func @transform_1(%arg0: i32) -> (i32, i32) {
    %c0_i32 = arith.constant 0 : i32
    %c0_i32_0 = arith.constant 0 : i32
    %c0_i32_1 = arith.constant 0 : i32
    return %c0_i32, %c0_i32_0 : i32, i32
  }
  func.func @transform_2(%arg0: i32) -> (i32, i32) {
    %c0_i32 = arith.constant 0 : i32
    %c0_i32_0 = arith.constant 0 : i32
    %c0_i32_1 = arith.constant 0 : i32
    return %c0_i32, %c0_i32_0 : i32, i32
  }
  func.func @transform_3(%arg0: i32) -> (i32, i32) {
    %c0_i32 = arith.constant 0 : i32
    %c0_i32_0 = arith.constant 0 : i32
    %c0_i32_1 = arith.constant 0 : i32
    return %c0_i32, %c0_i32_0 : i32, i32
  }
  func.func @transform_4(%arg0: i32) -> (i32, i32) {
    %c0_i32 = arith.constant 0 : i32
    %c0_i32_0 = arith.constant 0 : i32
    %c0_i32_1 = arith.constant 0 : i32
    return %c0_i32, %c0_i32_0 : i32, i32
  }
  func.func @transform_5(%arg0: i32) -> (i32, i32) {
    %c0_i32 = arith.constant 0 : i32
    %c0_i32_0 = arith.constant 0 : i32
    return %c0_i32, %arg0 : i32, i32
  }
}

</mosaic_0001>

<llo_original>
// kernel: tpu_custom_call.1
$region0: #{tpu_custom_call.1}
  #allocation0 [shape = 'u32[]', space=smem, size = 0x4, offset = 0x4, fixed_abs, tag = 'smem constant byte address 0x4 - core index']
  #allocation1 [shape = 'u32[144,128]{1,0:T(1,128)}', space=vmem, size = 0x12000, scoped, tag = 'internal scratch']
  #allocation2 [shape = 'f32[1,1]{1,0:T(1,128)S(6)}', space=smem, size = 0x200, scoped, tag = 'scoped memory for tpu_custom_call.1']
  %s0 = inlined_call_operand.hbm [shape: f32[8,64], index: 0, kind: input, shape index: {}]
  %s1 = inlined_call_operand.hbm [shape: f32[64,128], index: 1, kind: input, shape index: {}]
  %s2 = inlined_call_operand.vmem [shape: f32[1,128], index: 2, kind: input, shape index: {}]
  %s3 = inlined_call_operand.vmem [shape: f32[1,128], index: 3, kind: input, shape index: {}]
  %s4 = inlined_call_operand.<no memory space> [shape: f32[1,1], index: 4, kind: input, shape index: {}]
  %s5 = inlined_call_operand.hbm [shape: f32[1,8], index: 5, kind: output, shape index: {}]
  %s6 = sld [smem:[#allocation0]]
  $region38: #{tpu_custom_call.1} parent=0
    _
  %s8 = ssub.s32 1, %s6
  %s9 = scalar_select 0, %s8, %s6
  %10 = sst [smem:[#allocation2]] %s4
  $region1: #{tpu_custom_call.1} parent=0
    #allocation3 [shape = 'u8[4096]{0}', space=vmem, size = 0x1000, scoped, tag = 'input window, operand 0, single buffered']
    #allocation4 [shape = 's32[1]{0}', space=sflag, size = 0x4, scoped, tag = 'scoped memory for tpu_custom_call.1']
    #allocation5 [shape = 's32[1]{0}', space=sflag, size = 0x4, scoped, tag = 'scoped memory for tpu_custom_call.1']
    #allocation6 [shape = 'u8[32768]{0}', space=vmem, size = 0x8000, scoped, tag = 'input window, operand 1, single buffered']
    #allocation7 [shape = 's32[1]{0}', space=sflag, size = 0x4, scoped, tag = 'scoped memory for tpu_custom_call.1']
    #allocation8 [shape = 'u8[512]{0}', space=vmem, size = 0x400, scoped, tag = 'output window, operand 0, single buffered']
    %11 = vsyncpa [#allocation4], 0
    %12 = vsyncpa [#allocation7], 0
    %13 = vsyncpa [#allocation5], 0
    // Predicated region
    $region2: #{tpu_custom_call.1} parent=1 // pred_check
      _
    $region3: #{tpu_custom_call.1} parent=1 // pred_check_branch
      %15 = sbr.rel (0) target = $region5
    $region4: #{tpu_custom_call.1} parent=1 // pred_region
      %s17 = ssub.s32 128, 128
      %18 = vsyncadd [#allocation4], %s17
      %s20 = sshll.u32 [#allocation3], 4
      %s21 = int_to_ptr.vmem [resolvable:$true] %s20
      %23 = dma.hbm_to_vmem [thread:$0]  %s0, 128, %s21, [#allocation4]
    $region5: #{tpu_custom_call.1} parent=1 // pred_fallthru
      _
    // Predicated region
    $region6: #{tpu_custom_call.1} parent=1 // pred_check
      _
    $region7: #{tpu_custom_call.1} parent=1 // pred_check_branch
      %25 = sbr.rel (0) target = $region9
    $region8: #{tpu_custom_call.1} parent=1 // pred_region
      %s27 = ssub.s32 1024, 1024
      %28 = vsyncadd [#allocation7], %s27
      %s29 = sshll.u32 [#allocation6], 4
      %s30 = int_to_ptr.vmem [resolvable:$true] %s29
      %35 = dma.hbm_to_vmem [thread:$0]  %s1, 1024, %s30, [#allocation7], 128, 128, 8
    $region9: #{tpu_custom_call.1} parent=1 // pred_fallthru
      _
    // Predicated region
    $region10: #{tpu_custom_call.1} parent=1 // pred_check
      _
    $region11: #{tpu_custom_call.1} parent=1 // pred_check_branch
      %37 = sbr.rel (0) target = $region13
    $region12: #{tpu_custom_call.1} parent=1 // pred_region
      _
    $region13: #{tpu_custom_call.1} parent=1 // pred_fallthru
      _
    // Predicated region
    $region14: #{tpu_custom_call.1} parent=1 // pred_check
      _
    $region15: #{tpu_custom_call.1} parent=1 // pred_check_branch
      %39 = sbr.rel (0) target = $region17
    $region16: #{tpu_custom_call.1} parent=1 // pred_region
      _
    $region17: #{tpu_custom_call.1} parent=1 // pred_fallthru
      _
    // Predicated region
    $region18: #{tpu_custom_call.1} parent=1 // pred_check
      _
    $region19: #{tpu_custom_call.1} parent=1 // pred_check_branch
      %41 = sbr.rel (0) target = $region21
    $region20: #{tpu_custom_call.1} parent=1 // pred_region
      _
    $region21: #{tpu_custom_call.1} parent=1 // pred_fallthru
      _
    // Predicated region
    $region22: #{tpu_custom_call.1} parent=1 // pred_check
      _
    $region23: #{tpu_custom_call.1} parent=1 // pred_check_branch
      %43 = sbr.rel (0) target = $region25
    $region24: #{tpu_custom_call.1} parent=1 // pred_region
      %44 = dma.done [#allocation4], 128
    $region25: #{tpu_custom_call.1} parent=1 // pred_fallthru
      _
    // Predicated region
    $region26: #{tpu_custom_call.1} parent=1 // pred_check
      _
    $region27: #{tpu_custom_call.1} parent=1 // pred_check_branch
      %46 = sbr.rel (0) target = $region29
    $region28: #{tpu_custom_call.1} parent=1 // pred_region
      %47 = dma.done [#allocation7], 1024
    $region29: #{tpu_custom_call.1} parent=1 // pred_fallthru
      _
    %v48 = vld [vmem:[#allocation3] sm:$0xff]
    %v49 = vld [vmem:[#allocation6] sm:$0xff]
    %v50 = vld [vmem:[#allocation6 + $0x8] sm:$0xff]
    %v51 = vld [vmem:[#allocation6 + $0x10] sm:$0xff]
    %v52 = vld [vmem:[#allocation6 + $0x18] sm:$0xff]
    %v53 = vld [vmem:[#allocation6 + $0x20] sm:$0xff]
    %v54 = vld [vmem:[#allocation6 + $0x28] sm:$0xff]
    %v55 = vld [vmem:[#allocation6 + $0x30] sm:$0xff]
    %v56 = vld [vmem:[#allocation6 + $0x38] sm:$0xff]
    %v57 = vld [vmem:[%s2] sm:$0x1]
    %v59 = vlaneseq
    %v60 = vshrl.u32 %v59, 7
    %v61 = vsub.s32 0, %v60
    %v62 = vrot.slane %v57, %v61
    %vm64 = vcmask 523264
    %v66 = vsel %vm64, %v48, 0
    %68 = vmatprep.subr.mxu0 0.0
    %69 = vmatpush1.msra.mxu0 %v49
    %70 = vmatprep.subr.mxu0 0.0
    %71 = vmatpush1.msra.mxu0 %v50
    %72 = vmatprep.subr.mxu0 0.0
    %73 = vmatpush1.msra.mxu0 %v51
    %74 = vmatprep.subr.mxu0 0.0
    %75 = vmatpush1.msra.mxu0 %v52
    %76 = vmatprep.subr.mxu0 0.0
    %77 = vmatpush1.msra.mxu0 %v53
    %78 = vmatprep.subr.mxu0 0.0
    %79 = vmatpush1.msra.mxu0 %v54
    %80 = vmatprep.subr.mxu0 0.0
    %81 = vmatpush1.msra.mxu0 %v55
    %82 = vmatprep.subr.mxu0 0.0
    %83 = vmatpush1.msra.mxu0 %v56
    %84 = vmatprep.subr.mxu0 0.0
    %85 = vmatpush1.msra.mxu0 0.0
    %86 = vmatprep.subr.mxu0 0.0
    %87 = vmatpush1.msra.mxu0 0.0
    %88 = vmatprep.subr.mxu0 0.0
    %89 = vmatpush1.msra.mxu0 0.0
    %90 = vmatprep.subr.mxu0 0.0
    %91 = vmatpush1.msra.mxu0 0.0
    %92 = vmatprep.subr.mxu0 0.0
    %93 = vmatpush1.msra.mxu0 0.0
    %94 = vmatprep.subr.mxu0 0.0
    %95 = vmatpush1.msra.mxu0 0.0
    %96 = vmatprep.subr.mxu0 0.0
    %97 = vmatpush1.msra.mxu0 0.0
    %98 = vmatprep.subr.mxu0 0.0
    %99 = vmatpush1.msra.mxu0 0.0
    %100 = vmatprep.subr.mxu0 0.0
    %101 = vmatpush1.msra.mxu0 0.0
    %102 = vmatprep.subr.mxu0 0.0
    %103 = vmatpush1.msra.mxu0 0.0
    %104 = vmatprep.subr.mxu0 0.0
    %105 = vmatpush1.msra.mxu0 0.0
    %106 = vmatprep.subr.mxu0 0.0
    %107 = vmatpush1.msra.mxu0 0.0
    %108 = vmatprep.subr.mxu0 0.0
    %109 = vmatpush1.msra.mxu0 0.0
    %110 = vmatprep.subr.mxu0 0.0
    %111 = vmatpush1.msra.mxu0 0.0
    %112 = vmatprep.subr.mxu0 0.0
    %113 = vmatpush1.msra.mxu0 0.0
    %114 = vmatprep.subr.mxu0 0.0
    %115 = vmatpush1.msra.mxu0 0.0
    %116 = vmatprep.subr.mxu0 0.0
    %117 = vmatpush1.msra.mxu0 0.0
    %118 = vmatprep.subr.mxu0 0.0
    %119 = vmatpush1.msra.mxu0 0.0
    %120 = vmatprep.subr.mxu0 0.0
    %121 = vmatpush1.msra.mxu0 0.0
    %122 = vmatprep.subr.mxu0 0.0
    %123 = vmatpush1.msra.mxu0 0.0
    %124 = vmatprep.subr.mxu0 0.0
    %125 = vmatpush1.msra.mxu0 0.0
    %126 = vmatprep.subr.mxu0 0.0
    %127 = vmatpush1.msra.mxu0 0.0
    %128 = vmatprep.subr.mxu0 0.0
    %129 = vmatpush1.msra.mxu0 0.0
    %130 = vmatprep.subr.mxu0 0.0
    %131 = vmatpush1.msra.mxu0 0.0
    %132 = vmatprep.mubr.f32.mxu0 0.0
    %133 = vmatmul.mubr.f32.gmra.mrb[0].mxu0 %v66
    %v134 = vpop.f32.mrb[0].mxu0
    %v135 = vadd.f32 %v62, %v134
    %v136 = vpop.f32.mrb[0].mxu0
    %137 = vdwg.mxu0
    %v138 = vmax.f32 %v135, 0.0
    %v139 = vld [vmem:[%s3] sm:$0x1]
    %v141 = vlaneseq
    %v142 = vshrl.u32 %v141, 7
    %v143 = vsub.s32 0, %v142
    %v144 = vrot.slane %v139, %v143
    %v146 = vmul.f32 %v138, %v144
    %147 = vadd.xlane.f32.xlu0 %v146
    %v148 = vpop.xlane.xlu0 %147
    %s149 = sld [smem:[#allocation2]]
    %v150 = vstv %s149
    %v151 = vadd.f32 %v148, %v150
    %v153 = vlaneseq
    %v154 = vand.u32 %v153, 127
    %v155 = vlaneseq
    %v156 = vshrl.u32 %v155, 7
    %v157 = vsub.s32 %v154, %v156
    %v158 = vrot.slane %v151, %v157
    %vm160 = vcmask 57344
    %161 = vst.msk [vmem:[#allocation8] sm:$0x1] %vm160, %v158
    // Predicated region
    $region30: #{tpu_custom_call.1} parent=1 // pred_check
      _
    $region31: #{tpu_custom_call.1} parent=1 // pred_check_branch
      %163 = sbr.rel (0) target = $region33
    $region32: #{tpu_custom_call.1} parent=1 // pred_region
      %s165 = ssub.s32 16, 16
      %166 = vsyncadd [#allocation5], %s165
      %s168 = sshll.u32 [#allocation8], 4
      %s169 = int_to_ptr.vmem [resolvable:$true] %s168
      %171 = dma.vmem_to_hbm [thread:$0]  %s169, 16, %s5, [#allocation5]
    $region33: #{tpu_custom_call.1} parent=1 // pred_fallthru
      _
    // Predicated region
    $region34: #{tpu_custom_call.1} parent=1 // pred_check
      _
    $region35: #{tpu_custom_call.1} parent=1 // pred_check_branch
      %173 = sbr.rel (0) target = $region37
    $region36: #{tpu_custom_call.1} parent=1 // pred_region
      %174 = dma.done [#allocation5], 16
    $region37: #{tpu_custom_call.1} parent=1 // pred_fallthru
      _
    %175 = vsyncpa [#allocation4], 1
    %176 = vsyncpa [#allocation7], 1
    %177 = vsyncpa [#allocation5], 1

</llo_original>
